<compile_context>
chip_gen: v6e
topology: v6e:2x2x1
jax: 0.10.0
libtpu: 0.0.40
codegen_flags: <defaults>
</compile_context>

<pallas_src>
import functools

import jax
import jax.numpy as jnp
from jax.experimental import pallas as pl
from jax.experimental.pallas import tpu as pltpu


# --------------------------------- kernel ---------------------------------

def head_kernel(x_ref, w1_ref, b1_ref, w2_ref, b2_ref, o_ref):
    # x_ref:  (TB, H) CLS-feature tile, already in compute dtype (pipelined over batch)
    # w1_ref: (H, H)  dense weight, (in, out) layout  -> canonical MXU contraction
    # b1_ref: (1, H)  dense bias, f32
    # w2_ref: (H, L)  out_proj weight, (in, out) layout
    # b2_ref: (1, L)  out_proj bias, f32
    # o_ref:  (TB, L)
    h = jnp.dot(x_ref[...], w1_ref[...], preferred_element_type=jnp.float32)
    h = jnp.tanh(h + b1_ref[...])
    # TODO(synk): dropout is identity in eval mode; training-mode dropout would need
    # pltpu.prng_seed / pltpu.prng_random_bits.
    out = jnp.dot(h.astype(w2_ref.dtype), w2_ref[...],
                  preferred_element_type=jnp.float32)
    o_ref[...] = (out + b2_ref[...]).astype(o_ref.dtype)


# ----------------------- one-time weight prep (model load) -----------------------

def prepare_head_params(w_dense, b_dense, w_out, b_out, *, compute_dtype=jnp.bfloat16):
    """Call once at model-load time.

    Converts PyTorch Linear weights (out, in) -> (in, out) layout and casts them to
    the compute dtype (bf16 by default), so no per-call cast/transpose traffic remains.
    """
    compute_dtype = jnp.dtype(compute_dtype)
    w1_t = jnp.asarray(w_dense).T.astype(compute_dtype)          # (H, H)
    w2_t = jnp.asarray(w_out).T.astype(compute_dtype)            # (H, L)
    b1 = jnp.asarray(b_dense).reshape(1, -1).astype(jnp.float32)  # (1, H)
    b2 = jnp.asarray(b_out).reshape(1, -1).astype(jnp.float32)    # (1, L)
    return w1_t, b1, w2_t, b2


# ------------------------------ tile / VMEM sizing ------------------------------

def _round_up(x, m):
    return ((x + m - 1) // m) * m


@functools.lru_cache(maxsize=1)
def _vmem_capacity_bytes():
    try:
        return int(pltpu.get_tpu_info().vmem_capacity_bytes)
    except Exception:
        return 64 << 20  # v7x per-TensorCore VMEM: the smallest across v5e/v6e/v7x


def _select_tile(B, H, L, x_itemsize, w_itemsize, out_itemsize, block_b=None):
    """Pick a static batch tile + a VMEM limit from a per-generation budget."""
    phys = _vmem_capacity_bytes()
    budget = (phys * 3) // 4  # headroom for Mosaic matmul scratch / spills

    def step_bytes(tb, wbuf):
        weights = wbuf * ((H * H + H * L) * w_itemsize + (H + L) * 4)
        return (weights
                + 2 * tb * H * x_itemsize        # double-buffered x tile
                + 2 * tb * L * out_itemsize)     # double-buffered out tile

    if block_b is not None:
        tb = min(int(block_b), B)
        if tb < B and tb % 8 != 0:
            raise ValueError("block_b must be a multiple of 8 when it tiles the batch")
    elif B <= 16:
        tb = B  # single grid step; full-dim tile is always layout-legal
    else:
        # >= 2 grid steps (megacore on v7x, pipeline overlap everywhere), big tiles
        # (up to 1024 rows) to amortize per-step overhead, shrunk to fit VMEM.
        tb = min(1024, _round_up(-(-B // 2), 8))
        while tb > 8 and step_bytes(tb, 2) > budget:
            tb -= 8

    vmem_limit = int(min(phys, max(step_bytes(max(tb, 8), 2) + (8 << 20), 32 << 20)))
    return tb, vmem_limit


# --------------------------------- pallas call ---------------------------------

@functools.partial(jax.jit, static_argnames=("tb", "vmem_limit", "single_buffer_weights"))
def _head_impl(features, w1_t, b1, w2_t, b2, *, tb, vmem_limit, single_buffer_weights):
    B, S, H = features.shape
    L = w2_t.shape[1]

    # CLS gather fused with the compute-dtype cast (one slice/convert op, B*H elems).
    x = features[:, 0, :].astype(w1_t.dtype)

    grid = (pl.cdiv(B, tb),)
    mode = pl.Buffered(1) if single_buffer_weights else None
    kw = {} if mode is None else {"pipeline_mode": mode}

    in_specs = [
        pl.BlockSpec((tb, H), lambda i: (i, 0)),          # x tile: double-buffered
        pl.BlockSpec((H, H), lambda i: (0, 0), **kw),     # dense W^T: resident
        pl.BlockSpec((1, H), lambda i: (0, 0), **kw),     # dense bias
        pl.BlockSpec((H, L), lambda i: (0, 0), **kw),     # out_proj W^T: resident
        pl.BlockSpec((1, L), lambda i: (0, 0), **kw),     # out_proj bias
    ]
    out_specs = pl.BlockSpec((tb, L), lambda i: (i, 0))

    w_itemsize = jnp.dtype(w1_t.dtype).itemsize
    cost = pl.CostEstimate(
        flops=2 * B * H * H + 2 * B * H * L,
        transcendentals=B * H,
        bytes_accessed=(H * H + H * L) * w_itemsize       # weights DMA'd once
        + (H + L) * 4                                     # biases
        + B * H * w_itemsize                              # x (compute dtype)
        + B * L * jnp.dtype(features.dtype).itemsize,     # logits
    )

    return pl.pallas_call(
        head_kernel,
        out_shape=jax.ShapeDtypeStruct((B, L), features.dtype),
        grid_spec=pltpu.PrefetchScalarGridSpec(
            num_scalar_prefetch=0,
            grid=grid,
            in_specs=in_specs,
            out_specs=out_specs,
        ),
        compiler_params=pltpu.CompilerParams(
            dimension_semantics=("parallel",),   # batch tiles independent -> both v7x TCs
            vmem_limit_bytes=vmem_limit,
        ),
        cost_estimate=cost,
    )(x, w1_t, b1, w2_t, b2)


def classification_head(features, w1_t, b1, w2_t, b2, *, block_b=None):
    """features: [B, S, H]; params from prepare_head_params (pre-cast, (in,out) layout)."""
    assert features.ndim == 3
    B, S, H = features.shape
    L = w2_t.shape[1]
    c_itemsize = jnp.dtype(w1_t.dtype).itemsize           # x is cast to compute dtype
    out_itemsize = jnp.dtype(features.dtype).itemsize
    tb, vmem_limit = _select_tile(B, H, L, c_itemsize, c_itemsize, out_itemsize, block_b)

    # Prefer single-buffered resident weight blocks; gracefully fall back to default
    # double buffering if this build rejects pl.Buffered(1).
    try:
        return _head_impl(features, w1_t, b1, w2_t, b2,
                          tb=tb, vmem_limit=vmem_limit, single_buffer_weights=True)
    except Exception:
        return _head_impl(features, w1_t, b1, w2_t, b2,
                          tb=tb, vmem_limit=vmem_limit, single_buffer_weights=False)


# --------------------------------- reference ---------------------------------

def reference(features, w_dense, b_dense, w_out, b_out):
    x = features[:, 0, :]
    x = jnp.tanh(x @ w_dense.T + b_dense)
    return x @ w_out.T + b_out


if __name__ == "__main__":
    # Small config consistent with the module: hidden_size=32, num_labels=4.
    B, S, H, L = 2, 8, 32, 4
    key = jax.random.PRNGKey(0)
    k_feat, k_w1, k_b1, k_w2, k_b2 = jax.random.split(key, 5)

    features = jax.random.normal(k_feat, (B, S, H), dtype=jnp.float32)
    # PyTorch Linear weight layout: (out, in).
    w_dense = jax.random.normal(k_w1, (H, H), dtype=jnp.float32) * 0.05
    b_dense = jax.random.normal(k_b1, (H,), dtype=jnp.float32) * 0.05
    w_out = jax.random.normal(k_w2, (L, H), dtype=jnp.float32) * 0.05
    b_out = jax.random.normal(k_b2, (L,), dtype=jnp.float32) * 0.05

    ref = reference(features, w_dense, b_dense, w_out, b_out)

    # f32 path: tight tolerance (exact same kernel, f32 weights).
    params_f32 = prepare_head_params(w_dense, b_dense, w_out, b_out,
                                     compute_dtype=jnp.float32)
    out_f32 = jax.block_until_ready(classification_head(features, *params_f32))
    assert out_f32.shape == (B, L)
    assert jnp.allclose(out_f32, ref, atol=1e-5, rtol=1e-5), "f32 mismatch vs reference"

    # bf16-weight path (recommended deployment path): f32 accumulation -> loose tolerance.
    params_bf16 = prepare_head_params(w_dense, b_dense, w_out, b_out)  # default bf16
    out_bf16 = jax.block_until_ready(classification_head(features, *params_bf16))
    assert out_bf16.shape == (B, L)
    assert jnp.allclose(out_bf16, ref, atol=3e-2, rtol=3e-2), "bf16 mismatch vs reference"

    print("KERNEL_OK")
</pallas_src>

<mosaic_0001>
module attributes {stable_mosaic.version = 11 : i64} {
  func.func @head_kernel(%arg0: i32, %arg1: memref<2x32xf32, #tpu.memory_space<vmem>>, %arg2: memref<32x32xf32, #tpu.memory_space<vmem>>, %arg3: memref<1x32xf32, #tpu.memory_space<vmem>>, %arg4: memref<32x4xf32, #tpu.memory_space<vmem>>, %arg5: memref<1x4xf32, #tpu.memory_space<vmem>>, %arg6: memref<2x4xf32, #tpu.memory_space<vmem>>) attributes {dimension_semantics = [#tpu.dimension_semantics<parallel>], iteration_bounds = array<i64: 1>, scalar_prefetch = 0 : i64, scratch_operands = 0 : i64, tpu.core_type = #tpu.core_type<tc>, window_params = [{transform_indices = @transform_0, window_bounds = array<i64: 2, 32>}, {pipeline_mode = #tpu.pipeline_mode<synchronous>, transform_indices = @transform_1, window_bounds = array<i64: 32, 32>}, {pipeline_mode = #tpu.pipeline_mode<synchronous>, transform_indices = @transform_2, window_bounds = array<i64: 1, 32>}, {pipeline_mode = #tpu.pipeline_mode<synchronous>, transform_indices = @transform_3, window_bounds = array<i64: 32, 4>}, {pipeline_mode = #tpu.pipeline_mode<synchronous>, transform_indices = @transform_4, window_bounds = array<i64: 1, 4>}, {transform_indices = @transform_5, window_bounds = array<i64: 2, 4>}]} {
    %c0 = arith.constant 0 : index
    %c0_0 = arith.constant 0 : index
    %0 = vector.load %arg1[%c0, %c0_0] : memref<2x32xf32, #tpu.memory_space<vmem>>, vector<2x32xf32>
    %c0_1 = arith.constant 0 : index
    %c0_2 = arith.constant 0 : index
    %1 = vector.load %arg2[%c0_1, %c0_2] : memref<32x32xf32, #tpu.memory_space<vmem>>, vector<32x32xf32>
    %cst = arith.constant dense<0.000000e+00> : vector<2x32xf32>
    %2 = tpu.matmul %0, %1, %cst {dimension_numbers = #tpu.dot_dimension_numbers<[1], [0], [0], [1], [0, 0, 1, 1], [], []>} : vector<2x32xf32>, vector<32x32xf32>, vector<2x32xf32> -> vector<2x32xf32>
    %c0_3 = arith.constant 0 : index
    %c0_4 = arith.constant 0 : index
    %3 = vector.load %arg3[%c0_3, %c0_4] : memref<1x32xf32, #tpu.memory_space<vmem>>, vector<1x32xf32>
    %4 = vector.broadcast %3 : vector<1x32xf32> to vector<2x32xf32>
    %5 = arith.addf %2, %4 : vector<2x32xf32>
    %6 = math.tanh %5 : vector<2x32xf32>
    %c0_5 = arith.constant 0 : index
    %c0_6 = arith.constant 0 : index
    %7 = vector.load %arg4[%c0_5, %c0_6] : memref<32x4xf32, #tpu.memory_space<vmem>>, vector<32x4xf32>
    %cst_7 = arith.constant dense<0.000000e+00> : vector<2x4xf32>
    %8 = tpu.matmul %6, %7, %cst_7 {dimension_numbers = #tpu.dot_dimension_numbers<[1], [0], [0], [1], [0, 0, 1, 1], [], []>} : vector<2x32xf32>, vector<32x4xf32>, vector<2x4xf32> -> vector<2x4xf32>
    %c0_8 = arith.constant 0 : index
    %c0_9 = arith.constant 0 : index
    %9 = vector.load %arg5[%c0_8, %c0_9] : memref<1x4xf32, #tpu.memory_space<vmem>>, vector<1x4xf32>
    %10 = vector.broadcast %9 : vector<1x4xf32> to vector<2x4xf32>
    %11 = arith.addf %8, %10 : vector<2x4xf32>
    %c0_10 = arith.constant 0 : index
    %c0_11 = arith.constant 0 : index
    %12 = vector.load %arg6[%c0_10, %c0_11] : memref<2x4xf32, #tpu.memory_space<vmem>>, vector<2x4xf32>
    tpu.vector_store %arg6[%c0_10, %c0_11], %11 {strides = array<i32>} : memref<2x4xf32, #tpu.memory_space<vmem>>, vector<2x4xf32>,
    return
  }
  func.func @transform_0(%arg0: i32) -> (i32, i32) {
    %c0_i32 = arith.constant 0 : i32
    %c0_i32_0 = arith.constant 0 : i32
    return %arg0, %c0_i32 : i32, i32
  }
  func.func @transform_1(%arg0: i32) -> (i32, i32) {
    %c0_i32 = arith.constant 0 : i32
    %c0_i32_0 = arith.constant 0 : i32
    %c0_i32_1 = arith.constant 0 : i32
    return %c0_i32, %c0_i32_0 : i32, i32
  }
  func.func @transform_2(%arg0: i32) -> (i32, i32) {
    %c0_i32 = arith.constant 0 : i32
    %c0_i32_0 = arith.constant 0 : i32
    %c0_i32_1 = arith.constant 0 : i32
    return %c0_i32, %c0_i32_0 : i32, i32
  }
  func.func @transform_3(%arg0: i32) -> (i32, i32) {
    %c0_i32 = arith.constant 0 : i32
    %c0_i32_0 = arith.constant 0 : i32
    %c0_i32_1 = arith.constant 0 : i32
    return %c0_i32, %c0_i32_0 : i32, i32
  }
  func.func @transform_4(%arg0: i32) -> (i32, i32) {
    %c0_i32 = arith.constant 0 : i32
    %c0_i32_0 = arith.constant 0 : i32
    %c0_i32_1 = arith.constant 0 : i32
    return %c0_i32, %c0_i32_0 : i32, i32
  }
  func.func @transform_5(%arg0: i32) -> (i32, i32) {
    %c0_i32 = arith.constant 0 : i32
    %c0_i32_0 = arith.constant 0 : i32
    return %arg0, %c0_i32 : i32, i32
  }
}

module attributes {stable_mosaic.version = 11 : i64} {
  func.func @head_kernel(%arg0: i32, %arg1: memref<2x32xf32, #tpu.memory_space<vmem>>, %arg2: memref<32x32xf32, #tpu.memory_space<vmem>>, %arg3: memref<1x32xf32, #tpu.memory_space<vmem>>, %arg4: memref<32x4xf32, #tpu.memory_space<vmem>>, %arg5: memref<1x4xf32, #tpu.memory_space<vmem>>, %arg6: memref<2x4xf32, #tpu.memory_space<vmem>>) attributes {dimension_semantics = [#tpu.dimension_semantics<parallel>], iteration_bounds = array<i64: 1>, scalar_prefetch = 0 : i64, scratch_operands = 0 : i64, tpu.core_type = #tpu.core_type<tc>, window_params = [{transform_indices = @transform_0, window_bounds = array<i64: 2, 32>}, {pipeline_mode = #tpu.pipeline_mode<synchronous>, transform_indices = @transform_1, window_bounds = array<i64: 32, 32>}, {pipeline_mode = #tpu.pipeline_mode<synchronous>, transform_indices = @transform_2, window_bounds = array<i64: 1, 32>}, {pipeline_mode = #tpu.pipeline_mode<synchronous>, transform_indices = @transform_3, window_bounds = array<i64: 32, 4>}, {pipeline_mode = #tpu.pipeline_mode<synchronous>, transform_indices = @transform_4, window_bounds = array<i64: 1, 4>}, {transform_indices = @transform_5, window_bounds = array<i64: 2, 4>}]} {
    %c0 = arith.constant 0 : index
    %c0_0 = arith.constant 0 : index
    %0 = vector.load %arg1[%c0, %c0_0] : memref<2x32xf32, #tpu.memory_space<vmem>>, vector<2x32xf32>
    %c0_1 = arith.constant 0 : index
    %c0_2 = arith.constant 0 : index
    %1 = vector.load %arg2[%c0_1, %c0_2] : memref<32x32xf32, #tpu.memory_space<vmem>>, vector<32x32xf32>
    %cst = arith.constant dense<0.000000e+00> : vector<2x32xf32>
    %2 = tpu.matmul %0, %1, %cst {dimension_numbers = #tpu.dot_dimension_numbers<[1], [0], [0], [1], [0, 0, 1, 1], [], []>} : vector<2x32xf32>, vector<32x32xf32>, vector<2x32xf32> -> vector<2x32xf32>
    %c0_3 = arith.constant 0 : index
    %c0_4 = arith.constant 0 : index
    %3 = vector.load %arg3[%c0_3, %c0_4] : memref<1x32xf32, #tpu.memory_space<vmem>>, vector<1x32xf32>
    %4 = vector.broadcast %3 : vector<1x32xf32> to vector<2x32xf32>
    %5 = arith.addf %2, %4 : vector<2x32xf32>
    %6 = math.tanh %5 : vector<2x32xf32>
    %c0_5 = arith.constant 0 : index
    %c0_6 = arith.constant 0 : index
    %7 = vector.load %arg4[%c0_5, %c0_6] : memref<32x4xf32, #tpu.memory_space<vmem>>, vector<32x4xf32>
    %cst_7 = arith.constant dense<0.000000e+00> : vector<2x4xf32>
    %8 = tpu.matmul %6, %7, %cst_7 {dimension_numbers = #tpu.dot_dimension_numbers<[1], [0], [0], [1], [0, 0, 1, 1], [], []>} : vector<2x32xf32>, vector<32x4xf32>, vector<2x4xf32> -> vector<2x4xf32>
    %c0_8 = arith.constant 0 : index
    %c0_9 = arith.constant 0 : index
    %9 = vector.load %arg5[%c0_8, %c0_9] : memref<1x4xf32, #tpu.memory_space<vmem>>, vector<1x4xf32>
    %10 = vector.broadcast %9 : vector<1x4xf32> to vector<2x4xf32>
    %11 = arith.addf %8, %10 : vector<2x4xf32>
    %c0_10 = arith.constant 0 : index
    %c0_11 = arith.constant 0 : index
    %12 = vector.load %arg6[%c0_10, %c0_11] : memref<2x4xf32, #tpu.memory_space<vmem>>, vector<2x4xf32>
    tpu.vector_store %arg6[%c0_10, %c0_11], %11 {strides = array<i32>} : memref<2x4xf32, #tpu.memory_space<vmem>>, vector<2x4xf32>,
    return
  }
  func.func @transform_0(%arg0: i32) -> (i32, i32) {
    %c0_i32 = arith.constant 0 : i32
    %c0_i32_0 = arith.constant 0 : i32
    return %arg0, %c0_i32 : i32, i32
  }
  func.func @transform_1(%arg0: i32) -> (i32, i32) {
    %c0_i32 = arith.constant 0 : i32
    %c0_i32_0 = arith.constant 0 : i32
    %c0_i32_1 = arith.constant 0 : i32
    return %c0_i32, %c0_i32_0 : i32, i32
  }
  func.func @transform_2(%arg0: i32) -> (i32, i32) {
    %c0_i32 = arith.constant 0 : i32
    %c0_i32_0 = arith.constant 0 : i32
    %c0_i32_1 = arith.constant 0 : i32
    return %c0_i32, %c0_i32_0 : i32, i32
  }
  func.func @transform_3(%arg0: i32) -> (i32, i32) {
    %c0_i32 = arith.constant 0 : i32
    %c0_i32_0 = arith.constant 0 : i32
    %c0_i32_1 = arith.constant 0 : i32
    return %c0_i32, %c0_i32_0 : i32, i32
  }
  func.func @transform_4(%arg0: i32) -> (i32, i32) {
    %c0_i32 = arith.constant 0 : i32
    %c0_i32_0 = arith.constant 0 : i32
    %c0_i32_1 = arith.constant 0 : i32
    return %c0_i32, %c0_i32_0 : i32, i32
  }
  func.func @transform_5(%arg0: i32) -> (i32, i32) {
    %c0_i32 = arith.constant 0 : i32
    %c0_i32_0 = arith.constant 0 : i32
    return %arg0, %c0_i32 : i32, i32
  }
}

</mosaic_0001>

<llo_original>
// kernel: _head_impl.1
$region0: #{_head_impl.1}
  #allocation0 [shape = 'u32[]', space=smem, size = 0x4, offset = 0x4, fixed_abs, tag = 'smem constant byte address 0x4 - core index']
  #allocation1 [shape = 'u32[144,128]{1,0:T(1,128)}', space=vmem, size = 0x12000, scoped, tag = 'internal scratch']
  %s0 = inlined_call_operand.vmem [shape: f32[2,32], index: 0, kind: input, shape index: {}]
  %s1 = inlined_call_operand.vmem [shape: f32[32,32], index: 1, kind: input, shape index: {}]
  %s2 = inlined_call_operand.vmem [shape: f32[1,32], index: 2, kind: input, shape index: {}]
  %s3 = inlined_call_operand.vmem [shape: f32[32,4], index: 3, kind: input, shape index: {}]
  %s4 = inlined_call_operand.vmem [shape: f32[1,4], index: 4, kind: input, shape index: {}]
  %s5 = inlined_call_operand.hbm [shape: f32[2,4], index: 5, kind: output, shape index: {}]
  %s6 = sld [smem:[#allocation0]]
  $region30: #{_head_impl.1} parent=0
    _
  %s8 = ssub.s32 1, %s6
  %s9 = scalar_select 0, %s8, %s6
  $region1: #{_head_impl.1} parent=0
    #allocation2 [shape = 'u8[1024]{0}', space=vmem, size = 0x400, scoped, tag = 'output window, operand 0, single buffered']
    #allocation3 [shape = 's32[1]{0}', space=sflag, size = 0x4, scoped, tag = 'scoped memory for _head_impl.1']
    %10 = vsyncpa [#allocation3], 0
    // Predicated region
    $region2: #{_head_impl.1} parent=1 // pred_check
      _
    $region3: #{_head_impl.1} parent=1 // pred_check_branch
      %12 = sbr.rel (0) target = $region5
    $region4: #{_head_impl.1} parent=1 // pred_region
      _
    $region5: #{_head_impl.1} parent=1 // pred_fallthru
      _
    // Predicated region
    $region6: #{_head_impl.1} parent=1 // pred_check
      _
    $region7: #{_head_impl.1} parent=1 // pred_check_branch
      %14 = sbr.rel (0) target = $region9
    $region8: #{_head_impl.1} parent=1 // pred_region
      _
    $region9: #{_head_impl.1} parent=1 // pred_fallthru
      _
    // Predicated region
    $region10: #{_head_impl.1} parent=1 // pred_check
      _
    $region11: #{_head_impl.1} parent=1 // pred_check_branch
      %16 = sbr.rel (0) target = $region13
    $region12: #{_head_impl.1} parent=1 // pred_region
      _
    $region13: #{_head_impl.1} parent=1 // pred_fallthru
      _
    // Predicated region
    $region14: #{_head_impl.1} parent=1 // pred_check
      _
    $region15: #{_head_impl.1} parent=1 // pred_check_branch
      %18 = sbr.rel (0) target = $region17
    $region16: #{_head_impl.1} parent=1 // pred_region
      _
    $region17: #{_head_impl.1} parent=1 // pred_fallthru
      _
    // Predicated region
    $region18: #{_head_impl.1} parent=1 // pred_check
      _
    $region19: #{_head_impl.1} parent=1 // pred_check_branch
      %20 = sbr.rel (0) target = $region21
    $region20: #{_head_impl.1} parent=1 // pred_region
      _
    $region21: #{_head_impl.1} parent=1 // pred_fallthru
      _
    %v21 = vld [vmem:[%s0] sm:$0x3]
    %v22 = vld [vmem:[%s1] sm:$0xff]
    %v23 = vld [vmem:[%s1 + $0x8] sm:$0xff]
    %v24 = vld [vmem:[%s1 + $0x10] sm:$0xff]
    %v25 = vld [vmem:[%s1 + $0x18] sm:$0xff]
    %v26 = vld [vmem:[%s2] sm:$0x1]
    %v28 = vlaneseq
    %v29 = vshrl.u32 %v28, 7
    %v30 = vsub.s32 0, %v29
    %v31 = vrot.slane %v26, %v30
    %vm33 = vcmask 261120
    %v35 = vsel %vm33, %v21, 0
    %37 = vmatprep.subr.mxu0 0.0
    %38 = vmatpush1.msra.mxu0 0.0
    %39 = vmatprep.subr.mxu0 0.0
    %40 = vmatpush1.msra.mxu0 0.0
    %41 = vmatprep.subr.mxu0 0.0
    %42 = vmatpush1.msra.mxu0 0.0
    %43 = vmatprep.subr.mxu0 0.0
    %44 = vmatpush1.msra.mxu0 0.0
    %45 = vmatprep.subr.mxu0 0.0
    %46 = vmatpush1.msra.mxu0 0.0
    %47 = vmatprep.subr.mxu0 0.0
    %48 = vmatpush1.msra.mxu0 0.0
    %49 = vmatprep.subr.mxu0 0.0
    %50 = vmatpush1.msra.mxu0 0.0
    %51 = vmatprep.subr.mxu0 0.0
    %52 = vmatpush1.msra.mxu0 0.0
    %53 = vmatprep.subr.mxu0 0.0
    %54 = vmatpush1.msra.mxu0 0.0
    %55 = vmatprep.subr.mxu0 0.0
    %56 = vmatpush1.msra.mxu0 0.0
    %57 = vmatprep.subr.mxu0 0.0
    %58 = vmatpush1.msra.mxu0 0.0
    %59 = vmatprep.subr.mxu0 0.0
    %60 = vmatpush1.msra.mxu0 0.0
    %61 = vmatprep.subr.mxu0 0.0
    %62 = vmatpush1.msra.mxu0 %v25
    %63 = vmatprep.subr.mxu0 0.0
    %64 = vmatpush1.msra.mxu0 %v24
    %65 = vmatprep.subr.mxu0 0.0
    %66 = vmatpush1.msra.mxu0 %v23
    %67 = vmatprep.subr.mxu0 0.0
    %68 = vmatpush1.msra.mxu0 %v22
    %69 = vmatprep.subr.mxu0 0.0
    %70 = vmatpush2.msra.mxu0 0.0
    %71 = vmatprep.subr.mxu0 0.0
    %72 = vmatpush2.msra.mxu0 0.0
    %73 = vmatprep.subr.mxu0 0.0
    %74 = vmatpush2.msra.mxu0 0.0
    %75 = vmatprep.subr.mxu0 0.0
    %76 = vmatpush2.msra.mxu0 0.0
    %77 = vmatprep.subr.mxu0 0.0
    %78 = vmatpush2.msra.mxu0 0.0
    %79 = vmatprep.subr.mxu0 0.0
    %80 = vmatpush2.msra.mxu0 0.0
    %81 = vmatprep.subr.mxu0 0.0
    %82 = vmatpush2.msra.mxu0 0.0
    %83 = vmatprep.subr.mxu0 0.0
    %84 = vmatpush2.msra.mxu0 0.0
    %85 = vmatprep.subr.mxu0 0.0
    %86 = vmatpush2.msra.mxu0 0.0
    %87 = vmatprep.subr.mxu0 0.0
    %88 = vmatpush2.msra.mxu0 0.0
    %89 = vmatprep.subr.mxu0 0.0
    %90 = vmatpush2.msra.mxu0 0.0
    %91 = vmatprep.subr.mxu0 0.0
    %92 = vmatpush2.msra.mxu0 0.0
    %93 = vmatprep.subr.mxu0 0.0
    %94 = vmatpush2.msra.mxu0 0.0
    %95 = vmatprep.subr.mxu0 0.0
    %96 = vmatpush2.msra.mxu0 0.0
    %97 = vmatprep.subr.mxu0 0.0
    %98 = vmatpush2.msra.mxu0 0.0
    %99 = vmatprep.subr.mxu0 0.0
    %100 = vmatpush2.msra.mxu0 0.0
    %101 = vmatprep.mubr.f32.mxu0 0.0
    %102 = vmatmul.mubr.f32.gmra.mxu0 %v35
    %v103 = vpop.f32.mrf.mxu0
    %v104 = vadd.f32 %v31, %v103
    %v105 = vpop.f32.mrf.mxu0
    %106 = vdwg.mxu0
    %v107 = vtanh.pop %v104
    %v108 = vld [vmem:[%s3] sm:$0xff]
    %v109 = vld [vmem:[%s3 + $0x8] sm:$0xff]
    %v110 = vld [vmem:[%s3 + $0x10] sm:$0xff]
    %v111 = vld [vmem:[%s3 + $0x18] sm:$0xff]
    %v112 = vld [vmem:[%s4] sm:$0x1]
    %v114 = vlaneseq
    %v115 = vshrl.u32 %v114, 7
    %v116 = vsub.s32 0, %v115
    %v117 = vrot.slane %v112, %v116
    %v120 = vsel %vm33, %v107, 0
    %122 = vmatprep.subr.mxu0 0.0
    %123 = vmatpush1.msra.mxu0 0.0
    %124 = vmatprep.subr.mxu0 0.0
    %125 = vmatpush1.msra.mxu0 0.0
    %126 = vmatprep.subr.mxu0 0.0
    %127 = vmatpush1.msra.mxu0 0.0
    %128 = vmatprep.subr.mxu0 0.0
    %129 = vmatpush1.msra.mxu0 0.0
    %130 = vmatprep.subr.mxu0 0.0
    %131 = vmatpush1.msra.mxu0 0.0
    %132 = vmatprep.subr.mxu0 0.0
    %133 = vmatpush1.msra.mxu0 0.0
    %134 = vmatprep.subr.mxu0 0.0
    %135 = vmatpush1.msra.mxu0 0.0
    %136 = vmatprep.subr.mxu0 0.0
    %137 = vmatpush1.msra.mxu0 0.0
    %138 = vmatprep.subr.mxu0 0.0
    %139 = vmatpush1.msra.mxu0 0.0
    %140 = vmatprep.subr.mxu0 0.0
    %141 = vmatpush1.msra.mxu0 0.0
    %142 = vmatprep.subr.mxu0 0.0
    %143 = vmatpush1.msra.mxu0 0.0
    %144 = vmatprep.subr.mxu0 0.0
    %145 = vmatpush1.msra.mxu0 0.0
    %146 = vmatprep.subr.mxu0 0.0
    %147 = vmatpush1.msra.mxu0 %v111
    %148 = vmatprep.subr.mxu0 0.0
    %149 = vmatpush1.msra.mxu0 %v110
    %150 = vmatprep.subr.mxu0 0.0
    %151 = vmatpush1.msra.mxu0 %v109
    %152 = vmatprep.subr.mxu0 0.0
    %153 = vmatpush1.msra.mxu0 %v108
    %154 = vmatprep.subr.mxu0 0.0
    %155 = vmatpush2.msra.mxu0 0.0
    %156 = vmatprep.subr.mxu0 0.0
    %157 = vmatpush2.msra.mxu0 0.0
    %158 = vmatprep.subr.mxu0 0.0
    %159 = vmatpush2.msra.mxu0 0.0
    %160 = vmatprep.subr.mxu0 0.0
    %161 = vmatpush2.msra.mxu0 0.0
    %162 = vmatprep.subr.mxu0 0.0
    %163 = vmatpush2.msra.mxu0 0.0
    %164 = vmatprep.subr.mxu0 0.0
    %165 = vmatpush2.msra.mxu0 0.0
    %166 = vmatprep.subr.mxu0 0.0
    %167 = vmatpush2.msra.mxu0 0.0
    %168 = vmatprep.subr.mxu0 0.0
    %169 = vmatpush2.msra.mxu0 0.0
    %170 = vmatprep.subr.mxu0 0.0
    %171 = vmatpush2.msra.mxu0 0.0
    %172 = vmatprep.subr.mxu0 0.0
    %173 = vmatpush2.msra.mxu0 0.0
    %174 = vmatprep.subr.mxu0 0.0
    %175 = vmatpush2.msra.mxu0 0.0
    %176 = vmatprep.subr.mxu0 0.0
    %177 = vmatpush2.msra.mxu0 0.0
    %178 = vmatprep.subr.mxu0 0.0
    %179 = vmatpush2.msra.mxu0 0.0
    %180 = vmatprep.subr.mxu0 0.0
    %181 = vmatpush2.msra.mxu0 0.0
    %182 = vmatprep.subr.mxu0 0.0
    %183 = vmatpush2.msra.mxu0 0.0
    %184 = vmatprep.subr.mxu0 0.0
    %185 = vmatpush2.msra.mxu0 0.0
    %186 = vmatprep.mubr.f32.mxu0 0.0
    %187 = vmatmul.mubr.f32.gmra.mxu0 %v120
    %v188 = vpop.f32.mrf.mxu0
    %v189 = vadd.f32 %v117, %v188
    %v190 = vpop.f32.mrf.mxu0
    %191 = vdwg.mxu0
    %vm192 = vcmask 25600
    %193 = vst.msk [vmem:[#allocation2] sm:$0x3] %vm192, %v189
    // Predicated region
    $region22: #{_head_impl.1} parent=1 // pred_check
      _
    $region23: #{_head_impl.1} parent=1 // pred_check_branch
      %195 = sbr.rel (0) target = $region25
    $region24: #{_head_impl.1} parent=1 // pred_region
      %s197 = ssub.s32 32, 32
      %198 = vsyncadd [#allocation3], %s197
      %s200 = sshll.u32 [#allocation2], 4
      %s201 = int_to_ptr.vmem [resolvable:$true] %s200
      %203 = dma.vmem_to_hbm [thread:$0]  %s201, 32, %s5, [#allocation3]
    $region25: #{_head_impl.1} parent=1 // pred_fallthru
      _
    // Predicated region
    $region26: #{_head_impl.1} parent=1 // pred_check
      _
    $region27: #{_head_impl.1} parent=1 // pred_check_branch
      %205 = sbr.rel (0) target = $region29
    $region28: #{_head_impl.1} parent=1 // pred_region
      %206 = dma.done [#allocation3], 32
    $region29: #{_head_impl.1} parent=1 // pred_fallthru
      _
    %207 = vsyncpa [#allocation3], 1

// kernel: _head_impl.1
$region0: #{_head_impl.1}
  #allocation0 [shape = 'u32[]', space=smem, size = 0x4, offset = 0x4, fixed_abs, tag = 'smem constant byte address 0x4 - core index']
  #allocation1 [shape = 'u32[144,128]{1,0:T(1,128)}', space=vmem, size = 0x12000, scoped, tag = 'internal scratch']
  %s0 = inlined_call_operand.vmem [shape: f32[2,32], index: 0, kind: input, shape index: {}]
  %s1 = inlined_call_operand.vmem [shape: f32[32,32], index: 1, kind: input, shape index: {}]
  %s2 = inlined_call_operand.vmem [shape: f32[1,32], index: 2, kind: input, shape index: {}]
  %s3 = inlined_call_operand.vmem [shape: f32[32,4], index: 3, kind: input, shape index: {}]
  %s4 = inlined_call_operand.vmem [shape: f32[1,4], index: 4, kind: input, shape index: {}]
  %s5 = inlined_call_operand.hbm [shape: f32[2,4], index: 5, kind: output, shape index: {}]
  %s6 = sld [smem:[#allocation0]]
  $region30: #{_head_impl.1} parent=0
    _
  %s8 = ssub.s32 1, %s6
  %s9 = scalar_select 0, %s8, %s6
  $region1: #{_head_impl.1} parent=0
    #allocation2 [shape = 'u8[1024]{0}', space=vmem, size = 0x400, scoped, tag = 'output window, operand 0, single buffered']
    #allocation3 [shape = 's32[1]{0}', space=sflag, size = 0x4, scoped, tag = 'scoped memory for _head_impl.1']
    %10 = vsyncpa [#allocation3], 0
    // Predicated region
    $region2: #{_head_impl.1} parent=1 // pred_check
      _
    $region3: #{_head_impl.1} parent=1 // pred_check_branch
      %12 = sbr.rel (0) target = $region5
    $region4: #{_head_impl.1} parent=1 // pred_region
      _
    $region5: #{_head_impl.1} parent=1 // pred_fallthru
      _
    // Predicated region
    $region6: #{_head_impl.1} parent=1 // pred_check
      _
    $region7: #{_head_impl.1} parent=1 // pred_check_branch
      %14 = sbr.rel (0) target = $region9
    $region8: #{_head_impl.1} parent=1 // pred_region
      _
    $region9: #{_head_impl.1} parent=1 // pred_fallthru
      _
    // Predicated region
    $region10: #{_head_impl.1} parent=1 // pred_check
      _
    $region11: #{_head_impl.1} parent=1 // pred_check_branch
      %16 = sbr.rel (0) target = $region13
    $region12: #{_head_impl.1} parent=1 // pred_region
      _
    $region13: #{_head_impl.1} parent=1 // pred_fallthru
      _
    // Predicated region
    $region14: #{_head_impl.1} parent=1 // pred_check
      _
    $region15: #{_head_impl.1} parent=1 // pred_check_branch
      %18 = sbr.rel (0) target = $region17
    $region16: #{_head_impl.1} parent=1 // pred_region
      _
    $region17: #{_head_impl.1} parent=1 // pred_fallthru
      _
    // Predicated region
    $region18: #{_head_impl.1} parent=1 // pred_check
      _
    $region19: #{_head_impl.1} parent=1 // pred_check_branch
      %20 = sbr.rel (0) target = $region21
    $region20: #{_head_impl.1} parent=1 // pred_region
      _
    $region21: #{_head_impl.1} parent=1 // pred_fallthru
      _
    %v21 = vld [vmem:[%s0] sm:$0x3]
    %v22 = vld [vmem:[%s1] sm:$0xff]
    %v23 = vld [vmem:[%s1 + $0x8] sm:$0xff]
    %v24 = vld [vmem:[%s1 + $0x10] sm:$0xff]
    %v25 = vld [vmem:[%s1 + $0x18] sm:$0xff]
    %v26 = vld [vmem:[%s2] sm:$0x1]
    %v28 = vlaneseq
    %v29 = vshrl.u32 %v28, 7
    %v30 = vsub.s32 0, %v29
    %v31 = vrot.slane %v26, %v30
    %vm33 = vcmask 261120
    %v35 = vsel %vm33, %v21, 0
    %37 = vmatprep.subr.mxu0 0.0
    %38 = vmatpush1.msra.mxu0 0.0
    %39 = vmatprep.subr.mxu0 0.0
    %40 = vmatpush1.msra.mxu0 0.0
    %41 = vmatprep.subr.mxu0 0.0
    %42 = vmatpush1.msra.mxu0 0.0
    %43 = vmatprep.subr.mxu0 0.0
    %44 = vmatpush1.msra.mxu0 0.0
    %45 = vmatprep.subr.mxu0 0.0
    %46 = vmatpush1.msra.mxu0 0.0
    %47 = vmatprep.subr.mxu0 0.0
    %48 = vmatpush1.msra.mxu0 0.0
    %49 = vmatprep.subr.mxu0 0.0
    %50 = vmatpush1.msra.mxu0 0.0
    %51 = vmatprep.subr.mxu0 0.0
    %52 = vmatpush1.msra.mxu0 0.0
    %53 = vmatprep.subr.mxu0 0.0
    %54 = vmatpush1.msra.mxu0 0.0
    %55 = vmatprep.subr.mxu0 0.0
    %56 = vmatpush1.msra.mxu0 0.0
    %57 = vmatprep.subr.mxu0 0.0
    %58 = vmatpush1.msra.mxu0 0.0
    %59 = vmatprep.subr.mxu0 0.0
    %60 = vmatpush1.msra.mxu0 0.0
    %61 = vmatprep.subr.mxu0 0.0
    %62 = vmatpush1.msra.mxu0 %v25
    %63 = vmatprep.subr.mxu0 0.0
    %64 = vmatpush1.msra.mxu0 %v24
    %65 = vmatprep.subr.mxu0 0.0
    %66 = vmatpush1.msra.mxu0 %v23
    %67 = vmatprep.subr.mxu0 0.0
    %68 = vmatpush1.msra.mxu0 %v22
    %69 = vmatprep.subr.mxu0 0.0
    %70 = vmatpush2.msra.mxu0 0.0
    %71 = vmatprep.subr.mxu0 0.0
    %72 = vmatpush2.msra.mxu0 0.0
    %73 = vmatprep.subr.mxu0 0.0
    %74 = vmatpush2.msra.mxu0 0.0
    %75 = vmatprep.subr.mxu0 0.0
    %76 = vmatpush2.msra.mxu0 0.0
    %77 = vmatprep.subr.mxu0 0.0
    %78 = vmatpush2.msra.mxu0 0.0
    %79 = vmatprep.subr.mxu0 0.0
    %80 = vmatpush2.msra.mxu0 0.0
    %81 = vmatprep.subr.mxu0 0.0
    %82 = vmatpush2.msra.mxu0 0.0
    %83 = vmatprep.subr.mxu0 0.0
    %84 = vmatpush2.msra.mxu0 0.0
    %85 = vmatprep.subr.mxu0 0.0
    %86 = vmatpush2.msra.mxu0 0.0
    %87 = vmatprep.subr.mxu0 0.0
    %88 = vmatpush2.msra.mxu0 0.0
    %89 = vmatprep.subr.mxu0 0.0
    %90 = vmatpush2.msra.mxu0 0.0
    %91 = vmatprep.subr.mxu0 0.0
    %92 = vmatpush2.msra.mxu0 0.0
    %93 = vmatprep.subr.mxu0 0.0
    %94 = vmatpush2.msra.mxu0 0.0
    %95 = vmatprep.subr.mxu0 0.0
    %96 = vmatpush2.msra.mxu0 0.0
    %97 = vmatprep.subr.mxu0 0.0
    %98 = vmatpush2.msra.mxu0 0.0
    %99 = vmatprep.subr.mxu0 0.0
    %100 = vmatpush2.msra.mxu0 0.0
    %101 = vmatprep.mubr.f32.mxu0 0.0
    %102 = vmatmul.mubr.f32.gmra.mxu0 %v35
    %v103 = vpop.f32.mrf.mxu0
    %v104 = vadd.f32 %v31, %v103
    %v105 = vpop.f32.mrf.mxu0
    %106 = vdwg.mxu0
    %v107 = vtanh.pop %v104
    %v108 = vld [vmem:[%s3] sm:$0xff]
    %v109 = vld [vmem:[%s3 + $0x8] sm:$0xff]
    %v110 = vld [vmem:[%s3 + $0x10] sm:$0xff]
    %v111 = vld [vmem:[%s3 + $0x18] sm:$0xff]
    %v112 = vld [vmem:[%s4] sm:$0x1]
    %v114 = vlaneseq
    %v115 = vshrl.u32 %v114, 7
    %v116 = vsub.s32 0, %v115
    %v117 = vrot.slane %v112, %v116
    %v120 = vsel %vm33, %v107, 0
    %122 = vmatprep.subr.mxu0 0.0
    %123 = vmatpush1.msra.mxu0 0.0
    %124 = vmatprep.subr.mxu0 0.0
    %125 = vmatpush1.msra.mxu0 0.0
    %126 = vmatprep.subr.mxu0 0.0
    %127 = vmatpush1.msra.mxu0 0.0
    %128 = vmatprep.subr.mxu0 0.0
    %129 = vmatpush1.msra.mxu0 0.0
    %130 = vmatprep.subr.mxu0 0.0
    %131 = vmatpush1.msra.mxu0 0.0
    %132 = vmatprep.subr.mxu0 0.0
    %133 = vmatpush1.msra.mxu0 0.0
    %134 = vmatprep.subr.mxu0 0.0
    %135 = vmatpush1.msra.mxu0 0.0
    %136 = vmatprep.subr.mxu0 0.0
    %137 = vmatpush1.msra.mxu0 0.0
    %138 = vmatprep.subr.mxu0 0.0
    %139 = vmatpush1.msra.mxu0 0.0
    %140 = vmatprep.subr.mxu0 0.0
    %141 = vmatpush1.msra.mxu0 0.0
    %142 = vmatprep.subr.mxu0 0.0
    %143 = vmatpush1.msra.mxu0 0.0
    %144 = vmatprep.subr.mxu0 0.0
    %145 = vmatpush1.msra.mxu0 0.0
    %146 = vmatprep.subr.mxu0 0.0
    %147 = vmatpush1.msra.mxu0 %v111
    %148 = vmatprep.subr.mxu0 0.0
    %149 = vmatpush1.msra.mxu0 %v110
    %150 = vmatprep.subr.mxu0 0.0
    %151 = vmatpush1.msra.mxu0 %v109
    %152 = vmatprep.subr.mxu0 0.0
    %153 = vmatpush1.msra.mxu0 %v108
    %154 = vmatprep.subr.mxu0 0.0
    %155 = vmatpush2.msra.mxu0 0.0
    %156 = vmatprep.subr.mxu0 0.0
    %157 = vmatpush2.msra.mxu0 0.0
    %158 = vmatprep.subr.mxu0 0.0
    %159 = vmatpush2.msra.mxu0 0.0
    %160 = vmatprep.subr.mxu0 0.0
    %161 = vmatpush2.msra.mxu0 0.0
    %162 = vmatprep.subr.mxu0 0.0
    %163 = vmatpush2.msra.mxu0 0.0
    %164 = vmatprep.subr.mxu0 0.0
    %165 = vmatpush2.msra.mxu0 0.0
    %166 = vmatprep.subr.mxu0 0.0
    %167 = vmatpush2.msra.mxu0 0.0
    %168 = vmatprep.subr.mxu0 0.0
    %169 = vmatpush2.msra.mxu0 0.0
    %170 = vmatprep.subr.mxu0 0.0
    %171 = vmatpush2.msra.mxu0 0.0
    %172 = vmatprep.subr.mxu0 0.0
    %173 = vmatpush2.msra.mxu0 0.0
    %174 = vmatprep.subr.mxu0 0.0
    %175 = vmatpush2.msra.mxu0 0.0
    %176 = vmatprep.subr.mxu0 0.0
    %177 = vmatpush2.msra.mxu0 0.0
    %178 = vmatprep.subr.mxu0 0.0
    %179 = vmatpush2.msra.mxu0 0.0
    %180 = vmatprep.subr.mxu0 0.0
    %181 = vmatpush2.msra.mxu0 0.0
    %182 = vmatprep.subr.mxu0 0.0
    %183 = vmatpush2.msra.mxu0 0.0
    %184 = vmatprep.subr.mxu0 0.0
    %185 = vmatpush2.msra.mxu0 0.0
    %186 = vmatprep.mubr.f32.mxu0 0.0
    %187 = vmatmul.mubr.f32.gmra.mxu0 %v120
    %v188 = vpop.f32.mrf.mxu0
    %v189 = vadd.f32 %v117, %v188
    %v190 = vpop.f32.mrf.mxu0
    %191 = vdwg.mxu0
    %vm192 = vcmask 25600
    %193 = vst.msk [vmem:[#allocation2] sm:$0x3] %vm192, %v189
    // Predicated region
    $region22: #{_head_impl.1} parent=1 // pred_check
      _
    $region23: #{_head_impl.1} parent=1 // pred_check_branch
      %195 = sbr.rel (0) target = $region25
    $region24: #{_head_impl.1} parent=1 // pred_region
      %s197 = ssub.s32 32, 32
      %198 = vsyncadd [#allocation3], %s197
      %s200 = sshll.u32 [#allocation2], 4
      %s201 = int_to_ptr.vmem [resolvable:$true] %s200
      %203 = dma.vmem_to_hbm [thread:$0]  %s201, 32, %s5, [#allocation3]
    $region25: #{_head_impl.1} parent=1 // pred_fallthru
      _
    // Predicated region
    $region26: #{_head_impl.1} parent=1 // pred_check
      _
    $region27: #{_head_impl.1} parent=1 // pred_check_branch
      %205 = sbr.rel (0) target = $region29
    $region28: #{_head_impl.1} parent=1 // pred_region
      %206 = dma.done [#allocation3], 32
    $region29: #{_head_impl.1} parent=1 // pred_fallthru
      _
    %207 = vsyncpa [#allocation3], 1

</llo_original>
